<compile_context>
chip_gen: v7x
topology: tpu7x:2x2x1
jax: 0.10.0
libtpu: 0.0.40
codegen_flags: <defaults>
</compile_context>

<pallas_src>
import math

import numpy as np

import jax
import jax.numpy as jnp
from jax.experimental import pallas as pl
from jax.experimental.pallas import tpu as pltpu

_THRESHOLDS_DEG = np.array(
    [2.0919, 1.5026, 1.6009, 2.1762, 2.326, 2.1743, 2.0768, 1.9951,
     2.0089, 1.9652, 2.1529, 2.5862, 2.6576, 2.5778, 2.7211, 2.59],
    dtype=np.float32,
)
NUM_SEGMENTS = 16                      # loop length in the reference module
NUM_POINTS = 17                        # points consumed by the reference forward
PAIR_LANES = 2 * NUM_POINTS            # 34 interleaved (x, y) lanes per row
SEG_LANES = 2 * NUM_SEGMENTS           # 32 lanes carrying the 16 segment pairs
ANG_LANES = 3 * SEG_LANES              # 96 lanes: [center diffs | dir upper | dir lower]

_HALF_PI = math.pi / 2.0
_TWO_PI = 2.0 * math.pi
_INV_TWO_PI = 1.0 / _TWO_PI

# Threshold row (radians) with +inf in every lane that does not carry a
# segment value, so `loss > thr` doubles as the lane-validity mask.
_THR_ROW = np.full((1, ANG_LANES), np.inf, dtype=np.float32)
_THR_ROW[0, 0:SEG_LANES:2] = _THRESHOLDS_DEG * (np.pi / 180.0)


def _lane_shift(x, s):
    """out[:, j] = x[:, j + s]; wrapped tail lands only in don't-care lanes.

    Written as slice+concat so the shift direction is unambiguous; Mosaic
    lowers it to XLU lane rotates (the XLU is otherwise idle in this kernel).
    """
    return jnp.concatenate([x[:, s:], x[:, :s]], axis=1)


def _make_kernel(batch, rows_per_block):
    """Kernel closure over the static true batch size and the row block."""

    def kernel(c_ref, u_ref, l_ref, thr_ref, out_ref):
        # c_ref/u_ref/l_ref: (R, 34) rows with interleaved lanes x0,y0,x1,y1,...
        # thr_ref: (1, 96) thresholds in radians at lanes 2i, +inf elsewhere.
        # out_ref: (R, 1) per-row partial sums.
        c = c_ref[...]
        du = u_ref[...]
        dl = l_ref[...]

        # Segment vectors: lane 2i -> x_{i+1}-x_i, lane 2i+1 -> y_{i+1}-y_i.
        v = c[:, 2:PAIR_LANES] - c[:, 0:PAIR_LANES - 2]          # (R, 32)
        # Direction components of points 1..16 (same interleaved layout).
        du1 = du[:, 2:PAIR_LANES]                                # (R, 32)
        dl1 = dl[:, 2:PAIR_LANES]                                # (R, 32)

        # Pack all needed (y, x) pairs side by side -> a single atan2 pass.
        a = jnp.concatenate([v, du1, dl1], axis=1)               # (R, 96)
        ay = _lane_shift(a, 1)                                   # y onto the x lane
        ang = jnp.arctan2(ay, a)                                 # (R, 96)
        # lane 2i      : betas[i]            (i = 0..15)
        # lane 32 + 2i : theta_upper[i + 1]
        # lane 64 + 2i : theta_lower[i + 1]
        # (odd lanes / lanes >= 32 of the beta section are junk -> masked later)

        lane = jax.lax.broadcasted_iota(jnp.int32, ang.shape, 1)

        # beta_avg[i] = mean(betas[i], betas[i+1]) for i < 15, betas[15] at i = 15.
        b_next = _lane_shift(ang, 2)                             # betas[i+1] at lane 2i
        b_next = jnp.where(lane == 2 * (NUM_SEGMENTS - 1), ang, b_next)
        beta_avg = jnp.float32(0.5) * (ang + b_next) + jnp.float32(_HALF_PI)

        # thetas[i+1] = 0.5 * (theta_upper[i+1] + theta_lower[i+1]) at lane 2i.
        theta = jnp.float32(0.5) * (_lane_shift(ang, SEG_LANES)
                                    + _lane_shift(ang, 2 * SEG_LANES))

        d = beta_avg - theta
        # Cheap angle wrap: d - 2*pi*round(d/(2*pi)); |diff| matches
        # |atan2(sin d, cos d)| (sign at exactly +/-pi may differ -> abs is same).
        k = jnp.floor(d * jnp.float32(_INV_TWO_PI) + jnp.float32(0.5))
        loss = jnp.abs(d - jnp.float32(_TWO_PI) * k)             # (R, 96)

        thr = thr_ref[...]                                       # (1, 96)
        # Row mask is load-bearing: padded rows of a partial last block carry
        # garbage that could otherwise pass the threshold test.
        row = (jax.lax.broadcasted_iota(jnp.int32, loss.shape, 0)
               + pl.program_id(0) * rows_per_block)
        keep = (loss > thr) & (row < batch)                      # +inf thr kills junk lanes
        masked = jnp.where(keep, loss, jnp.float32(0.0))

        out_ref[...] = jnp.sum(masked, axis=1, keepdims=True)    # (R, 1)

    return kernel


def angle_constraint_loss(centers, directions_upper, directions_lower):
    """centers/directions_*: (B, N, 2) float arrays with N >= 17. Returns scalar."""
    B, N = centers.shape[0], centers.shape[1]
    assert N >= NUM_POINTS, "need at least 17 points (16 segments)"
    if N > NUM_POINTS:
        # The reference forward only ever touches the first 17 points.
        centers = centers[:, :NUM_POINTS]
        directions_upper = directions_upper[:, :NUM_POINTS]
        directions_lower = directions_lower[:, :NUM_POINTS]

    # Free, contiguous reshapes: (B, 17, 2) -> (B, 34).  No repack / transpose
    # / pad pass over HBM before the kernel.
    c2 = centers.astype(jnp.float32).reshape(B, PAIR_LANES)
    u2 = directions_upper.astype(jnp.float32).reshape(B, PAIR_LANES)
    l2 = directions_lower.astype(jnp.float32).reshape(B, PAIR_LANES)
    thr = jnp.asarray(_THR_ROW)

    # Row-block selection:
    #   * tiny batches -> a single block (block dim == full array dim is legal),
    #   * B > 1024 -> >= 2 blocks so the "parallel" axis can be split across
    #     v7x's two TensorCores, capped at 2048 rows/step so double-buffered
    #     inputs + in-kernel temporaries stay well inside scoped VMEM on every
    #     generation (v5e included, with the explicit limit below).
    if B <= 1024:
        rows = B
    else:
        rows = min(2048, ((B + 1) // 2 + 7) // 8 * 8)
    num_blocks = pl.cdiv(B, rows)

    partial = pl.pallas_call(
        _make_kernel(B, rows),
        out_shape=jax.ShapeDtypeStruct((B, 1), jnp.float32),
        grid=(num_blocks,),
        in_specs=[
            pl.BlockSpec((rows, PAIR_LANES), lambda j: (j, 0)),
            pl.BlockSpec((rows, PAIR_LANES), lambda j: (j, 0)),
            pl.BlockSpec((rows, PAIR_LANES), lambda j: (j, 0)),
            pl.BlockSpec((1, ANG_LANES), lambda j: (0, 0)),
        ],
        out_specs=pl.BlockSpec((rows, 1), lambda j: (j, 0)),
        compiler_params=pltpu.CompilerParams(
            dimension_semantics=("parallel",),
            vmem_limit_bytes=32 * 1024 * 1024),
    )(c2, u2, l2, thr)

    # total_loss / 16 == sum(masked) / (B * 16); padded rows were masked to 0.
    return jnp.sum(partial) / jnp.float32(B * NUM_SEGMENTS)


def _reference_loss(centers, directions_upper, directions_lower):
    """Pure-JAX port of the PyTorch forward (for verification)."""
    thresholds = jnp.asarray(_THRESHOLDS_DEG)
    center_vecs = centers[:, 1:, :] - centers[:, :-1, :]
    betas = jnp.arctan2(center_vecs[:, :, 1], center_vecs[:, :, 0])
    tu = jnp.arctan2(directions_upper[:, :, 1], directions_upper[:, :, 0])
    tl = jnp.arctan2(directions_lower[:, :, 1], directions_lower[:, :, 0])
    thetas = (tu + tl) / 2
    total = 0.0
    for i in range(16):
        if i < 15:
            beta_avg = betas[:, i:i + 2].mean(axis=1) + jnp.pi / 2
        else:
            beta_avg = betas[:, i] + jnp.pi / 2
        theta_i = thetas[:, i + 1]
        d = beta_avg - theta_i
        diff = jnp.arctan2(jnp.sin(d), jnp.cos(d))
        threshold = thresholds[i] * jnp.pi / 180
        loss_i = jnp.abs(diff)
        loss_i = loss_i * (loss_i > threshold).astype(jnp.float32)
        total = total + loss_i.mean()
    return total / 16


if __name__ == "__main__":
    key = jax.random.PRNGKey(0)
    k1, k2, k3 = jax.random.split(key, 3)

    B, N = 2, 17  # 17 points -> 16 segments, matching the 16-iteration loop
    centers = jax.random.normal(k1, (B, N, 2), dtype=jnp.float32)
    directions_upper = jax.random.normal(k2, (B, N, 2), dtype=jnp.float32)
    directions_lower = jax.random.normal(k3, (B, N, 2), dtype=jnp.float32)

    loss = angle_constraint_loss(centers, directions_upper, directions_lower)
    loss = jax.block_until_ready(loss)

    ref = _reference_loss(centers, directions_upper, directions_lower)
    assert jnp.allclose(loss, ref, atol=2e-5, rtol=2e-5), (loss, ref)

    print("KERNEL_OK")
</pallas_src>

<mosaic_0001>
module attributes {stable_mosaic.version = 11 : i64} {
  func.func @kernel(%arg0: i32, %arg1: memref<2x34xf32, #tpu.memory_space<vmem>>, %arg2: memref<2x34xf32, #tpu.memory_space<vmem>>, %arg3: memref<2x34xf32, #tpu.memory_space<vmem>>, %arg4: memref<1x96xf32, #tpu.memory_space<vmem>>, %arg5: memref<2x1xf32, #tpu.memory_space<vmem>>) attributes {dimension_semantics = [#tpu.dimension_semantics<parallel>], iteration_bounds = array<i64: 1>, scalar_prefetch = 0 : i64, scratch_operands = 0 : i64, tpu.core_type = #tpu.core_type<tc>, window_params = [{transform_indices = @transform_0, window_bounds = array<i64: 2, 34>}, {transform_indices = @transform_1, window_bounds = array<i64: 2, 34>}, {transform_indices = @transform_2, window_bounds = array<i64: 2, 34>}, {pipeline_mode = #tpu.pipeline_mode<synchronous>, transform_indices = @transform_3, window_bounds = array<i64: 1, 96>}, {transform_indices = @transform_4, window_bounds = array<i64: 2, 1>}]} {
    %c0 = arith.constant 0 : index
    %c0_0 = arith.constant 0 : index
    %0 = vector.load %arg1[%c0, %c0_0] : memref<2x34xf32, #tpu.memory_space<vmem>>, vector<2x34xf32>
    %c0_1 = arith.constant 0 : index
    %c0_2 = arith.constant 0 : index
    %1 = vector.load %arg2[%c0_1, %c0_2] : memref<2x34xf32, #tpu.memory_space<vmem>>, vector<2x34xf32>
    %c0_3 = arith.constant 0 : index
    %c0_4 = arith.constant 0 : index
    %2 = vector.load %arg3[%c0_3, %c0_4] : memref<2x34xf32, #tpu.memory_space<vmem>>, vector<2x34xf32>
    %3 = vector.extract_strided_slice %0 {offsets = [0, 2], sizes = [2, 32], strides = [1, 1]} : vector<2x34xf32> to vector<2x32xf32>
    %4 = vector.extract_strided_slice %0 {offsets = [0, 0], sizes = [2, 32], strides = [1, 1]} : vector<2x34xf32> to vector<2x32xf32>
    %5 = arith.subf %3, %4 : vector<2x32xf32>
    %6 = vector.extract_strided_slice %1 {offsets = [0, 2], sizes = [2, 32], strides = [1, 1]} : vector<2x34xf32> to vector<2x32xf32>
    %7 = vector.extract_strided_slice %2 {offsets = [0, 2], sizes = [2, 32], strides = [1, 1]} : vector<2x34xf32> to vector<2x32xf32>
    %8 = tpu.concatenate %5, %6, %7 in 1 : vector<2x32xf32>, vector<2x32xf32>, vector<2x32xf32> -> vector<2x96xf32>
    %9 = vector.extract_strided_slice %8 {offsets = [0, 1], sizes = [2, 95], strides = [1, 1]} : vector<2x96xf32> to vector<2x95xf32>
    %10 = vector.extract_strided_slice %8 {offsets = [0, 0], sizes = [2, 1], strides = [1, 1]} : vector<2x96xf32> to vector<2x1xf32>
    %11 = tpu.concatenate %9, %10 in 1 : vector<2x95xf32>, vector<2x1xf32> -> vector<2x96xf32>
    %12 = math.atan2 %11, %8 : vector<2x96xf32>
    %13 = tpu.iota {dimensions = array<i32: 1>} : vector<2x96xi32>
    %14 = vector.extract_strided_slice %12 {offsets = [0, 2], sizes = [2, 94], strides = [1, 1]} : vector<2x96xf32> to vector<2x94xf32>
    %15 = vector.extract_strided_slice %12 {offsets = [0, 0], sizes = [2, 2], strides = [1, 1]} : vector<2x96xf32> to vector<2x2xf32>
    %16 = tpu.concatenate %14, %15 in 1 : vector<2x94xf32>, vector<2x2xf32> -> vector<2x96xf32>
    %c30_i32 = arith.constant 30 : i32
    %17 = vector.broadcast %c30_i32 : i32 to vector<2x96xi32>
    %18 = arith.cmpi eq, %13, %17 : vector<2x96xi32>
    %19 = arith.select %18, %12, %16 : vector<2x96xi1>, vector<2x96xf32>
    %20 = arith.addf %12, %19 : vector<2x96xf32>
    %cst = arith.constant 5.000000e-01 : f32
    %21 = vector.broadcast %cst : f32 to vector<2x96xf32>
    %22 = arith.mulf %21, %20 : vector<2x96xf32>
    %cst_5 = arith.constant 1.57079637 : f32
    %23 = vector.broadcast %cst_5 : f32 to vector<2x96xf32>
    %24 = arith.addf %22, %23 : vector<2x96xf32>
    %25 = vector.extract_strided_slice %12 {offsets = [0, 32], sizes = [2, 64], strides = [1, 1]} : vector<2x96xf32> to vector<2x64xf32>
    %26 = vector.extract_strided_slice %12 {offsets = [0, 0], sizes = [2, 32], strides = [1, 1]} : vector<2x96xf32> to vector<2x32xf32>
    %27 = tpu.concatenate %25, %26 in 1 : vector<2x64xf32>, vector<2x32xf32> -> vector<2x96xf32>
    %28 = vector.extract_strided_slice %12 {offsets = [0, 64], sizes = [2, 32], strides = [1, 1]} : vector<2x96xf32> to vector<2x32xf32>
    %29 = vector.extract_strided_slice %12 {offsets = [0, 0], sizes = [2, 64], strides = [1, 1]} : vector<2x96xf32> to vector<2x64xf32>
    %30 = tpu.concatenate %28, %29 in 1 : vector<2x32xf32>, vector<2x64xf32> -> vector<2x96xf32>
    %31 = arith.addf %27, %30 : vector<2x96xf32>
    %cst_6 = arith.constant 5.000000e-01 : f32
    %32 = vector.broadcast %cst_6 : f32 to vector<2x96xf32>
    %33 = arith.mulf %32, %31 : vector<2x96xf32>
    %34 = arith.subf %24, %33 : vector<2x96xf32>
    %cst_7 = arith.constant 0.159154937 : f32
    %35 = vector.broadcast %cst_7 : f32 to vector<2x96xf32>
    %36 = arith.mulf %34, %35 : vector<2x96xf32>
    %cst_8 = arith.constant 5.000000e-01 : f32
    %37 = vector.broadcast %cst_8 : f32 to vector<2x96xf32>
    %38 = arith.addf %36, %37 : vector<2x96xf32>
    %39 = math.floor %38 : vector<2x96xf32>
    %cst_9 = arith.constant 6.28318548 : f32
    %40 = vector.broadcast %cst_9 : f32 to vector<2x96xf32>
    %41 = arith.mulf %40, %39 : vector<2x96xf32>
    %42 = arith.subf %34, %41 : vector<2x96xf32>
    %43 = math.absf %42 : vector<2x96xf32>
    %c0_10 = arith.constant 0 : index
    %c0_11 = arith.constant 0 : index
    %44 = vector.load %arg4[%c0_10, %c0_11] : memref<1x96xf32, #tpu.memory_space<vmem>>, vector<1x96xf32>
    %45 = tpu.iota {dimensions = array<i32: 0>} : vector<2x96xi32>
    %c2_i32 = arith.constant 2 : i32
    %46 = arith.muli %arg0, %c2_i32 : i32
    %47 = vector.broadcast %46 : i32 to vector<2x96xi32>
    %48 = arith.addi %45, %47 : vector<2x96xi32>
    %49 = vector.broadcast %44 : vector<1x96xf32> to vector<2x96xf32>
    %50 = arith.cmpf ogt, %43, %49 : vector<2x96xf32>
    %c2_i32_12 = arith.constant 2 : i32
    %51 = vector.broadcast %c2_i32_12 : i32 to vector<2x96xi32>
    %52 = arith.cmpi slt, %48, %51 : vector<2x96xi32>
    %53 = arith.andi %50, %52 : vector<2x96xi1>
    %cst_13 = arith.constant 0.000000e+00 : f32
    %54 = vector.broadcast %cst_13 : f32 to vector<2x96xf32>
    %55 = arith.select %53, %43, %54 : vector<2x96xi1>, vector<2x96xf32>
    %cst_14 = arith.constant dense<0.000000e+00> : vector<2xf32>
    %56 = vector.multi_reduction <add>, %55, %cst_14 [1] : vector<2x96xf32> to vector<2xf32>
    %57 = vector.shape_cast %56 : vector<2xf32> to vector<2x1xf32>
    %c0_15 = arith.constant 0 : index
    %c0_16 = arith.constant 0 : index
    %58 = vector.load %arg5[%c0_15, %c0_16] : memref<2x1xf32, #tpu.memory_space<vmem>>, vector<2x1xf32>
    tpu.vector_store %arg5[%c0_15, %c0_16], %57 {strides = array<i32>} : memref<2x1xf32, #tpu.memory_space<vmem>>, vector<2x1xf32>,
    return
  }
  func.func @transform_0(%arg0: i32) -> (i32, i32) {
    %c0_i32 = arith.constant 0 : i32
    %c0_i32_0 = arith.constant 0 : i32
    return %arg0, %c0_i32 : i32, i32
  }
  func.func @transform_1(%arg0: i32) -> (i32, i32) {
    %c0_i32 = arith.constant 0 : i32
    %c0_i32_0 = arith.constant 0 : i32
    return %arg0, %c0_i32 : i32, i32
  }
  func.func @transform_2(%arg0: i32) -> (i32, i32) {
    %c0_i32 = arith.constant 0 : i32
    %c0_i32_0 = arith.constant 0 : i32
    return %arg0, %c0_i32 : i32, i32
  }
  func.func @transform_3(%arg0: i32) -> (i32, i32) {
    %c0_i32 = arith.constant 0 : i32
    %c0_i32_0 = arith.constant 0 : i32
    %c0_i32_1 = arith.constant 0 : i32
    return %c0_i32, %c0_i32_0 : i32, i32
  }
  func.func @transform_4(%arg0: i32) -> (i32, i32) {
    %c0_i32 = arith.constant 0 : i32
    %c0_i32_0 = arith.constant 0 : i32
    return %arg0, %c0_i32 : i32, i32
  }
}

</mosaic_0001>

<llo_original>
// kernel: tpu_custom_call.1
$region0: #{tpu_custom_call.1}
  #allocation0 [shape = 'u32[]', space=smem, size = 0x4, offset = 0x4, fixed_abs, tag = 'smem constant byte address 0x4 - core index']
  #allocation1 [shape = 'u32[144,128]{1,0:T(1,128)}', space=vmem, size = 0x12000, scoped, tag = 'internal scratch']
  %s0 = inlined_call_operand.hbm [shape: f32[2,34], index: 0, kind: input, shape index: {}]
  %s1 = inlined_call_operand.vmem [shape: f32[2,34], index: 1, kind: input, shape index: {}]
  %s2 = inlined_call_operand.vmem [shape: f32[2,34], index: 2, kind: input, shape index: {}]
  %s3 = inlined_call_operand.vmem [shape: f32[1,96], index: 3, kind: input, shape index: {}]
  %s4 = inlined_call_operand.vmem [shape: f32[2,1], index: 4, kind: output, shape index: {}]
  %s5 = sld [smem:[#allocation0]]
  $region30: #{tpu_custom_call.1} parent=0
    _
  %s7 = ssub.s32 1, %s5
  %s8 = scalar_select 0, %s7, %s5
  $region1: #{tpu_custom_call.1} parent=0
    #allocation2 [shape = 'u8[1024]{0}', space=vmem, size = 0x400, scoped, tag = 'input window, operand 0, single buffered']
    #allocation3 [shape = 's32[1]{0}', space=sflag, size = 0x4, scoped, tag = 'scoped memory for tpu_custom_call.1']
    %9 = vsyncpa [#allocation3], 0
    // Predicated region
    $region2: #{tpu_custom_call.1} parent=1 // pred_check
      _
    $region3: #{tpu_custom_call.1} parent=1 // pred_check_branch
      %11 = sbr.rel (0) target = $region5
    $region4: #{tpu_custom_call.1} parent=1 // pred_region
      %s13 = ssub.s32 32, 32
      %14 = vsyncadd [#allocation3], %s13
      %s16 = sshll.u32 [#allocation2], 4
      %s17 = int_to_ptr.vmem [resolvable:$true] %s16
      %19 = dma.hbm_to_vmem [thread:$0]  %s0, 32, %s17, [#allocation3]
    $region5: #{tpu_custom_call.1} parent=1 // pred_fallthru
      _
    // Predicated region
    $region6: #{tpu_custom_call.1} parent=1 // pred_check
      _
    $region7: #{tpu_custom_call.1} parent=1 // pred_check_branch
      %21 = sbr.rel (0) target = $region9
    $region8: #{tpu_custom_call.1} parent=1 // pred_region
      _
    $region9: #{tpu_custom_call.1} parent=1 // pred_fallthru
      _
    // Predicated region
    $region10: #{tpu_custom_call.1} parent=1 // pred_check
      _
    $region11: #{tpu_custom_call.1} parent=1 // pred_check_branch
      %23 = sbr.rel (0) target = $region13
    $region12: #{tpu_custom_call.1} parent=1 // pred_region
      _
    $region13: #{tpu_custom_call.1} parent=1 // pred_fallthru
      _
    // Predicated region
    $region14: #{tpu_custom_call.1} parent=1 // pred_check
      _
    $region15: #{tpu_custom_call.1} parent=1 // pred_check_branch
      %25 = sbr.rel (0) target = $region17
    $region16: #{tpu_custom_call.1} parent=1 // pred_region
      _
    $region17: #{tpu_custom_call.1} parent=1 // pred_fallthru
      _
    // Predicated region
    $region18: #{tpu_custom_call.1} parent=1 // pred_check
      _
    $region19: #{tpu_custom_call.1} parent=1 // pred_check_branch
      %27 = sbr.rel (0) target = $region21
    $region20: #{tpu_custom_call.1} parent=1 // pred_region
      %28 = dma.done [#allocation3], 32
    $region21: #{tpu_custom_call.1} parent=1 // pred_fallthru
      _
    %v29 = vld [vmem:[#allocation2] sm:$0x3]
    %v30 = vld [vmem:[%s1] sm:$0x3]
    %v31 = vld [vmem:[%s2] sm:$0x3]
    %33 = vrot.lane.b32.xlu0 %v29, 2
    %v34 = vpop.permute.xlu0 %33
    %v36 = vsub.f32 %v29, %v34
    %38 = vrot.lane.b32.xlu0 %v36, 126
    %v39 = vpop.permute.xlu0 %38
    %42 = vrot.lane.b32.xlu0 %v30, 30
    %v43 = vpop.permute.xlu0 %42
    %46 = vrot.lane.b32.xlu0 %v31, 62
    %v47 = vpop.permute.xlu0 %46
    %vm49 = vcmask 261120
    %v50 = vsel %vm49, %v39, %v43
    %vm51 = vcmask 523264
    %v52 = vsel %vm51, %v50, %v47
    %54 = vrot.lane.b32.xlu0 %v52, 127
    %v55 = vpop.permute.xlu0 %54
    %57 = vrot.lane.b32.xlu0 %v52, 95
    %v58 = vpop.permute.xlu0 %57
    %vm60 = vcmask 777216
    %v61 = vsel %vm60, %v55, %v58
    %v62 = vand.u32 2147483647, %v52
    %v63 = vand.u32 2147483647, %v61
    %v64 = vmin.f32 %v62, %v63
    %v65 = vmax.f32 %v62, %v63
    %v66 = vrcp.pop %v65
    %v67 = vmul.f32 %v64, %v66
    %v68 = vmul.f32 %v67, %v67
    %v69 = vmul.f32 0.002785687, %v68
    %v70 = vadd.f32 %v69, -0.015866
    %v71 = vmul.f32 %v70, %v68
    %v72 = vadd.f32 %v71, 0.04247222
    %v73 = vmul.f32 %v72, %v68
    %v74 = vadd.f32 %v73, -0.074975304
    %v75 = vmul.f32 %v74, %v68
    %v76 = vadd.f32 %v75, 0.1064488
    %v77 = vmul.f32 %v76, %v68
    %v78 = vadd.f32 %v77, -0.14207031
    %v79 = vmul.f32 %v78, %v68
    %v80 = vadd.f32 %v79, 0.19993454
    %v81 = vmul.f32 %v80, %v68
    %v82 = vadd.f32 %v81, -0.33333147
    %v83 = vmul.f32 %v82, %v68
    %v84 = vmul.f32 %v83, %v67
    %v85 = vadd.f32 %v84, %v67
    %vm86 = vcmp.gt.f32.partialorder %v63, %v62
    %v87 = vsub.f32 1.5707964, %v85
    %v88 = vsel %vm86, %v87, %v85
    %vm89 = vcmp.lt.f32.partialorder %v52, 0.0
    %v90 = vsub.f32 3.1415927, %v88
    %v91 = vsel %vm89, %v90, %v88
    %vm92 = vcmp.lt.s32.totalorder %v52, 0
    %v93 = vsel %vm92, 3.1415927, 0.0
    %vm94 = vcmp.eq.f32.partialorder %v61, 0.0
    %v95 = vsel %vm94, %v93, %v91
    %vm96 = vcmp.ne.f32.partialorder %v52, %v52
    %vm97 = vcmp.ne.f32.partialorder %v61, %v61
    %vm98 = vmor %vm96, %vm97
    %v99 = vsel %vm98, nan, %v95
    %vm100 = vcmp.lt.f32.partialorder %v52, 0.0
    %v101 = vsel %vm100, 2.3561945, 0.7853982
    %vm102 = vcmp.eq.s32.totalorder %v62, inf
    %vm103 = vcmp.eq.s32.totalorder %v63, inf
    %vm104 = vmand %vm102, %vm103
    %v105 = vsel %vm104, %v101, %v99
    %v106 = vand.u32 2147483647, %v105
    %v107 = vand.u32 %v61, 2147483648
    %v108 = vor.u32 %v106, %v107
    %v109 = vlaneseq
    %v110 = vand.u32 %v109, 127
    %112 = vrot.lane.b32.xlu0 %v108, 126
    %v113 = vpop.permute.xlu0 %112
    %115 = vrot.lane.b32.xlu0 %v108, 94
    %v116 = vpop.permute.xlu0 %115
    %vm118 = vcmask 769024
    %v119 = vsel %vm118, %v113, %v116
    %vm120 = vcmp.eq.s32.totalorder %v110, 30
    %v121 = vsel %vm120, %v108, %v119
    %v122 = vadd.f32 %v108, %v121
    %v123 = vmul.f32 %v122, 0.5
    %v124 = vadd.f32 %v123, 1.5707964
    %125 = vrot.lane.b32.xlu0 %v108, 96
    %v126 = vpop.permute.xlu0 %125
    %128 = vrot.lane.b32.xlu0 %v108, 64
    %v129 = vpop.permute.xlu0 %128
    %v131 = vsel %vm51, %v126, %v129
    %132 = vrot.lane.b32.xlu0 %v108, 32
    %v133 = vpop.permute.xlu0 %132
    %v135 = vsel %vm49, %v129, %v133
    %v136 = vadd.f32 %v131, %v135
    %v137 = vmul.f32 %v136, 0.5
    %v138 = vsub.f32 %v124, %v137
    %v139 = vmul.f32 %v138, 0.15915494
    %v140 = vadd.f32 %v139, 0.5
    %v141 = vfloor.f32 %v140
    %v142 = vmul.f32 %v141, 6.2831855
    %v143 = vsub.f32 %v138, %v142
    %v144 = vand.u32 2147483647, %v143
    %v145 = vld [vmem:[%s3] sm:$0x1]
    %v146 = vlaneseq
    %v147 = vshrl.u32 %v146, 7
    %s148 = smul.u32 0, 2
    %v149 = vstv %s148
    %v150 = vadd.s32 %v147, %v149
    %v152 = vlaneseq
    %v153 = vshrl.u32 %v152, 7
    %v154 = vsub.s32 0, %v153
    %v155 = vrot.slane %v145, %v154
    %vm157 = vcmp.gt.f32.partialorder %v144, %v155
    %vm158 = vcmp.lt.s32.totalorder %v150, 2
    %vm159 = vmand %vm157, %vm158
    %v160 = vsel %vm159, %v144, 0.0
    %vm161 = vcmask 779264
    %v162 = vsel %vm161, %v160, 0.0
    %163 = vadd.xlane.f32.xlu0 %v162
    %v164 = vpop.xlane.xlu0 %163
    %vm165 = vcmask 1024
    %166 = vst.msk [vmem:[%s4] sm:$0x3] %vm165, %v164
    // Predicated region
    $region22: #{tpu_custom_call.1} parent=1 // pred_check
      _
    $region23: #{tpu_custom_call.1} parent=1 // pred_check_branch
      %168 = sbr.rel (0) target = $region25
    $region24: #{tpu_custom_call.1} parent=1 // pred_region
      _
    $region25: #{tpu_custom_call.1} parent=1 // pred_fallthru
      _
    // Predicated region
    $region26: #{tpu_custom_call.1} parent=1 // pred_check
      _
    $region27: #{tpu_custom_call.1} parent=1 // pred_check_branch
      %170 = sbr.rel (0) target = $region29
    $region28: #{tpu_custom_call.1} parent=1 // pred_region
      _
    $region29: #{tpu_custom_call.1} parent=1 // pred_fallthru
      _
    %171 = vsyncpa [#allocation3], 1

</llo_original>
